<compile_context>
chip_gen: v5e
topology: v5e:2x2
jax: 0.10.0
libtpu: 0.0.40
codegen_flags: <defaults>
</compile_context>

<pallas_src>
import jax
import jax.numpy as jnp
from jax.experimental import pallas as pl
from jax.experimental.pallas import tpu as pltpu

NUM_TYPES = 4            # cfg['dataset']['edge_encoder_num_types']
EMB_DIM = 64             # emb_dim (matches gt.dim_hidden in the config)
MAX_TILE_EDGES = 4096    # edges per grid step -> 1 MiB f32 output block


def _edge_embed_kernel(idx_ref, tbl_ref, out_ref):
    # idx_ref: (tile, 1) int32 edge-type ids
    # tbl_ref: (num_types, emb_dim) float32 embedding table (whole table, tiny)
    # out_ref: (tile, emb_dim) float32
    idx = idx_ref[...]                      # (tile, 1)
    tbl = tbl_ref[...]                      # (num_types, emb_dim)
    num_types = tbl.shape[0]
    # Nested select chain (pure VPU, no MXU, no adds). Default 0.0 keeps the
    # documented "OOB / negative index -> zero row" behavior.
    acc = jnp.where(idx == num_types - 1, tbl[num_types - 1:num_types, :], 0.0)
    for t in range(num_types - 2, -1, -1):
        acc = jnp.where(idx == t, tbl[t:t + 1, :], acc)
    out_ref[...] = acc.astype(out_ref.dtype)


def _next_pow2(n):
    return 1 << max(int(n) - 1, 0).bit_length()


def type_dict_edge_encoder(edge_attr, embedding_table, max_tile_edges=MAX_TILE_EDGES):
    """edge_attr: (E,) integer indices in [0, num_types).
       embedding_table: (num_types, emb_dim) float32 (nn.Embedding weight).
       returns: (E, emb_dim) float32 -- the new batch.edge_attr."""
    E = int(edge_attr.shape[0])
    num_types, emb_dim = embedding_table.shape

    # Round max tile down to a power of two so it always divides the bucketed size.
    max_tile_edges = 1 << (max(int(max_tile_edges), 8).bit_length() - 1)

    # Bucket E to the next power of two (>=16) -> few distinct grid shapes, so few
    # Mosaic recompiles across variable-size graph batches. Keep >= 2 grid steps so
    # v7x's two TensorCores both get work.
    e_pad = max(16, _next_pow2(E))
    tile = min(max_tile_edges, e_pad // 2)        # power of two, >= 8, divides e_pad
    grid = (e_pad // tile,)

    idx = jnp.zeros((e_pad, 1), jnp.int32).at[:E, 0].set(edge_attr.astype(jnp.int32))
    tbl = embedding_table.astype(jnp.float32)

    out = pl.pallas_call(
        _edge_embed_kernel,
        out_shape=jax.ShapeDtypeStruct((e_pad, emb_dim), jnp.float32),
        grid_spec=pltpu.PrefetchScalarGridSpec(
            num_scalar_prefetch=0,
            grid=grid,
            in_specs=[
                pl.BlockSpec((tile, 1), lambda i: (i, 0)),
                pl.BlockSpec((num_types, emb_dim), lambda i: (0, 0)),
            ],
            out_specs=pl.BlockSpec((tile, emb_dim), lambda i: (i, 0)),
        ),
        compiler_params=pltpu.CompilerParams(
            dimension_semantics=("parallel",),
            # (tile,1) int32 blocks lane-pad to (tile,128) in VMEM; with double
            # buffering of idx + out this is ~8 MiB at tile=4096 -- give headroom.
            vmem_limit_bytes=32 * 1024 * 1024,
        ),
        cost_estimate=pl.CostEstimate(
            flops=2 * e_pad * num_types * emb_dim,
            transcendentals=0,
            bytes_accessed=e_pad * 4 + e_pad * emb_dim * 4 + num_types * emb_dim * 4,
        ),
    )(idx, tbl)

    # Leading-dim slice only (no minor-dim relayout); free when E hits the bucket size
    # and fusable into the consumer under jit otherwise.
    return out if e_pad == E else out[:E]


if __name__ == "__main__":
    key = jax.random.PRNGKey(0)
    k_idx, k_tbl, k_idx2 = jax.random.split(key, 3)

    # Deterministic "parameters": embedding table matching nn.Embedding(4, 64) init (N(0,1)).
    embedding_table = jax.random.normal(k_tbl, (NUM_TYPES, EMB_DIM), dtype=jnp.float32)

    # Small demo-sized edge set: E = 16 edges with integer type ids.
    E_small = 16
    edge_attr = jax.random.randint(k_idx, (E_small,), 0, NUM_TYPES, dtype=jnp.int32)
    out = jax.block_until_ready(type_dict_edge_encoder(edge_attr, embedding_table))
    ref = jnp.take(embedding_table, edge_attr, axis=0)
    assert out.shape == (E_small, EMB_DIM)
    assert jnp.allclose(out, ref, atol=1e-6), "mismatch vs embedding reference (small)"

    # Larger, non-power-of-two E: exercises the multi-tile grid and the pad-and-slice path.
    E_big = 3001
    edge_attr_big = jax.random.randint(k_idx2, (E_big,), 0, NUM_TYPES, dtype=jnp.int32)
    out_big = jax.block_until_ready(type_dict_edge_encoder(edge_attr_big, embedding_table))
    ref_big = jnp.take(embedding_table, edge_attr_big, axis=0)
    assert out_big.shape == (E_big, EMB_DIM)
    assert jnp.allclose(out_big, ref_big, atol=1e-6), "mismatch vs embedding reference (big)"

    print("KERNEL_OK")
</pallas_src>

<mosaic_0001>
module attributes {stable_mosaic.version = 11 : i64} {
  func.func @_edge_embed_kernel(%arg0: i32, %arg1: memref<8x1xi32, #tpu.memory_space<vmem>>, %arg2: memref<4x64xf32, #tpu.memory_space<vmem>>, %arg3: memref<8x64xf32, #tpu.memory_space<vmem>>) attributes {dimension_semantics = [#tpu.dimension_semantics<parallel>], iteration_bounds = array<i64: 2>, scalar_prefetch = 0 : i64, scratch_operands = 0 : i64, tpu.core_type = #tpu.core_type<tc>, window_params = [{transform_indices = @transform_0, window_bounds = array<i64: 8, 1>}, {pipeline_mode = #tpu.pipeline_mode<synchronous>, transform_indices = @transform_1, window_bounds = array<i64: 4, 64>}, {transform_indices = @transform_2, window_bounds = array<i64: 8, 64>}]} {
    %c0 = arith.constant 0 : index
    %c0_0 = arith.constant 0 : index
    %0 = vector.load %arg1[%c0, %c0_0] : memref<8x1xi32, #tpu.memory_space<vmem>>, vector<8x1xi32>
    %c0_1 = arith.constant 0 : index
    %c0_2 = arith.constant 0 : index
    %1 = vector.load %arg2[%c0_1, %c0_2] : memref<4x64xf32, #tpu.memory_space<vmem>>, vector<4x64xf32>
    %c3_i32 = arith.constant 3 : i32
    %2 = vector.broadcast %c3_i32 : i32 to vector<8x1xi32>
    %3 = arith.cmpi eq, %0, %2 : vector<8x1xi32>
    %4 = vector.extract_strided_slice %1 {offsets = [3, 0], sizes = [1, 64], strides = [1, 1]} : vector<4x64xf32> to vector<1x64xf32>
    %cst = arith.constant 0.000000e+00 : f32
    %5 = vector.shape_cast %3 : vector<8x1xi1> to vector<8x1xi1>
    %6 = vector.broadcast %5 : vector<8x1xi1> to vector<8x64xi1>
    %7 = vector.shape_cast %4 : vector<1x64xf32> to vector<1x64xf32>
    %8 = vector.broadcast %7 : vector<1x64xf32> to vector<8x64xf32>
    %9 = vector.broadcast %cst : f32 to vector<8x64xf32>
    %10 = arith.select %6, %8, %9 : vector<8x64xi1>, vector<8x64xf32>
    %c2_i32 = arith.constant 2 : i32
    %11 = vector.broadcast %c2_i32 : i32 to vector<8x1xi32>
    %12 = arith.cmpi eq, %0, %11 : vector<8x1xi32>
    %13 = vector.extract_strided_slice %1 {offsets = [2, 0], sizes = [1, 64], strides = [1, 1]} : vector<4x64xf32> to vector<1x64xf32>
    %14 = vector.shape_cast %12 : vector<8x1xi1> to vector<8x1xi1>
    %15 = vector.broadcast %14 : vector<8x1xi1> to vector<8x64xi1>
    %16 = vector.shape_cast %13 : vector<1x64xf32> to vector<1x64xf32>
    %17 = vector.broadcast %16 : vector<1x64xf32> to vector<8x64xf32>
    %18 = arith.select %15, %17, %10 : vector<8x64xi1>, vector<8x64xf32>
    %c1_i32 = arith.constant 1 : i32
    %19 = vector.broadcast %c1_i32 : i32 to vector<8x1xi32>
    %20 = arith.cmpi eq, %0, %19 : vector<8x1xi32>
    %21 = vector.extract_strided_slice %1 {offsets = [1, 0], sizes = [1, 64], strides = [1, 1]} : vector<4x64xf32> to vector<1x64xf32>
    %22 = vector.shape_cast %20 : vector<8x1xi1> to vector<8x1xi1>
    %23 = vector.broadcast %22 : vector<8x1xi1> to vector<8x64xi1>
    %24 = vector.shape_cast %21 : vector<1x64xf32> to vector<1x64xf32>
    %25 = vector.broadcast %24 : vector<1x64xf32> to vector<8x64xf32>
    %26 = arith.select %23, %25, %18 : vector<8x64xi1>, vector<8x64xf32>
    %c0_i32 = arith.constant 0 : i32
    %27 = vector.broadcast %c0_i32 : i32 to vector<8x1xi32>
    %28 = arith.cmpi eq, %0, %27 : vector<8x1xi32>
    %29 = vector.extract_strided_slice %1 {offsets = [0, 0], sizes = [1, 64], strides = [1, 1]} : vector<4x64xf32> to vector<1x64xf32>
    %30 = vector.shape_cast %28 : vector<8x1xi1> to vector<8x1xi1>
    %31 = vector.broadcast %30 : vector<8x1xi1> to vector<8x64xi1>
    %32 = vector.shape_cast %29 : vector<1x64xf32> to vector<1x64xf32>
    %33 = vector.broadcast %32 : vector<1x64xf32> to vector<8x64xf32>
    %34 = arith.select %31, %33, %26 : vector<8x64xi1>, vector<8x64xf32>
    %c0_3 = arith.constant 0 : index
    %c0_4 = arith.constant 0 : index
    %35 = vector.load %arg3[%c0_3, %c0_4] : memref<8x64xf32, #tpu.memory_space<vmem>>, vector<8x64xf32>
    tpu.vector_store %arg3[%c0_3, %c0_4], %34 {strides = array<i32>} : memref<8x64xf32, #tpu.memory_space<vmem>>, vector<8x64xf32>,
    return
  }
  func.func @transform_0(%arg0: i32) -> (i32, i32) {
    %c0_i32 = arith.constant 0 : i32
    %c0_i32_0 = arith.constant 0 : i32
    return %arg0, %c0_i32 : i32, i32
  }
  func.func @transform_1(%arg0: i32) -> (i32, i32) {
    %c0_i32 = arith.constant 0 : i32
    %c0_i32_0 = arith.constant 0 : i32
    %c0_i32_1 = arith.constant 0 : i32
    return %c0_i32, %c0_i32_0 : i32, i32
  }
  func.func @transform_2(%arg0: i32) -> (i32, i32) {
    %c0_i32 = arith.constant 0 : i32
    %c0_i32_0 = arith.constant 0 : i32
    return %arg0, %c0_i32 : i32, i32
  }
}

</mosaic_0001>

<llo_original>
// kernel: tpu_custom_call.1
$region0: #{tpu_custom_call.1}
  #allocation0 [shape = 'u32[]', space=smem, size = 0x4, offset = 0x4, fixed_abs, tag = 'smem constant byte address 0x4 - core index']
  #allocation1 [shape = 'u32[72,128]{1,0:T(1,128)}', space=vmem, size = 0x9000, scoped, tag = 'internal scratch']
  %s0 = inlined_call_operand.vmem [shape: s32[16,1], index: 0, kind: input, shape index: {}]
  %s1 = inlined_call_operand.vmem [shape: f32[4,64], index: 1, kind: input, shape index: {}]
  %s2 = inlined_call_operand.hbm [shape: f32[16,64], index: 2, kind: output, shape index: {}]
  %s3 = sld [smem:[#allocation0]]
  $region41: #{tpu_custom_call.1} parent=0
    _
  %s5 = ssub.s32 1, %s3
  %s6 = scalar_select 0, %s5, %s3
  $region1: #{tpu_custom_call.1} parent=0
    #allocation2 [shape = 'u8[8192]{0}', space=vmem, size = 0x2000, scoped, tag = 'output window, operand 0']
    #allocation3 [shape = 's32[2]{0}', space=sflag, size = 0x8, scoped, tag = 'scoped memory for tpu_custom_call.1']
    %7 = vsyncpa [#allocation3], 0
    %s8 = scalar_lea.sflag [#allocation3], 1
    %9 = vsyncpa %s8, 0
    loop: start=0, step=1, limit=4
    $region2: #{tpu_custom_call.1} parent=1 // loop_pre_header
      _
    $region3: #{tpu_custom_call.1} parent=1 // loop_header
      %s11 = sphi 0, %s15
      %p12 = scmp.ge.s32.totalorder %s11, 4
      %s21 = sphi 0, %s23
      %s24 = sphi 0, %s21
      %s25 = sphi 0, %s24
      %s41 = sphi 0, %s25
      %s45 = sphi 0, %s45
      %s47 = sphi 0, %s45
      %s48 = sphi 0, %s47
      %s62 = sphi 0, %s48
      %s68 = sphi 0, %s70
      %s71 = sphi 0, %s68
      %s72 = sphi 0, %s71
      %s88 = sphi 0, %s72
    $region4: #{tpu_custom_call.1} parent=1 // loop_header_branch
      %14 = sbr.rel (%p12) target = $region8
    $region5: #{tpu_custom_call.1} parent=1 // loop_body
      %s16 = ssub.s32 %s11, 1
      %s17 = ssub.s32 %s11, 2
      %s18 = sadd.s32 %s11, 1
      %s19 = ssub.s32 %s11, %s18
      %p20 = scmp.eq.s32.totalorder %s19, 0
      %s22 = sadd.s32 %s21, 1
      %s23 = scalar_select %p20, %s21, %s22
      %p26 = pneg %p20
      %p27 = scmp.eq.s32.totalorder %s11, 1
      %p28 = por %p26, %p27
      %p29 = scmp.ne.s32.totalorder %s21, %s24
      %p30 = scmp.eq.s32.totalorder %s11, 0
      %p31 = por %p29, %p30
      %p32 = scmp.ne.s32.totalorder %s21, %s24
      %p33 = scmp.eq.s32.totalorder %s16, 1
      %p34 = por %p32, %p33
      %p35 = scmp.ne.s32.totalorder %s24, %s25
      %p36 = scmp.eq.s32.totalorder %s16, 0
      %p37 = por %p35, %p36
      %p38 = scmp.ne.s32.totalorder %s24, %s25
      %p39 = scmp.eq.s32.totalorder %s17, 1
      %p40 = por %p38, %p39
      %p42 = scmp.ne.s32.totalorder %s25, %s41
      %p43 = scmp.eq.s32.totalorder %s17, 0
      %p44 = por %p42, %p43
      %s46 = sadd.s32 %s45, 1
      %p49 = scmp.eq.s32.totalorder %s11, 1
      %p50 = scmp.ne.s32.totalorder %s45, %s47
      %p51 = scmp.eq.s32.totalorder %s11, 0
      %p52 = por %p50, %p51
      %p53 = scmp.ne.s32.totalorder %s45, %s47
      %p54 = scmp.eq.s32.totalorder %s16, 1
      %p55 = por %p53, %p54
      %p56 = scmp.ne.s32.totalorder %s47, %s48
      %p57 = scmp.eq.s32.totalorder %s16, 0
      %p58 = por %p56, %p57
      %p59 = scmp.ne.s32.totalorder %s47, %s48
      %p60 = scmp.eq.s32.totalorder %s17, 1
      %p61 = por %p59, %p60
      %p63 = scmp.ne.s32.totalorder %s48, %s62
      %p64 = scmp.eq.s32.totalorder %s17, 0
      %p65 = por %p63, %p64
      %s66 = ssub.s32 %s11, %s18
      %p67 = scmp.eq.s32.totalorder %s66, 0
      %s69 = sadd.s32 %s68, 1
      %s70 = scalar_select %p67, %s68, %s69
      %p73 = pneg %p67
      %p74 = scmp.eq.s32.totalorder %s11, 1
      %p75 = por %p73, %p74
      %p76 = scmp.ne.s32.totalorder %s68, %s71
      %p77 = scmp.eq.s32.totalorder %s11, 0
      %p78 = por %p76, %p77
      %p79 = scmp.ne.s32.totalorder %s68, %s71
      %p80 = scmp.eq.s32.totalorder %s16, 1
      %p81 = por %p79, %p80
      %p82 = scmp.ne.s32.totalorder %s71, %s72
      %p83 = scmp.eq.s32.totalorder %s16, 0
      %p84 = por %p82, %p83
      %p85 = scmp.ne.s32.totalorder %s71, %s72
      %p86 = scmp.eq.s32.totalorder %s17, 1
      %p87 = por %p85, %p86
      %p89 = scmp.ne.s32.totalorder %s72, %s88
      %p90 = scmp.eq.s32.totalorder %s17, 0
      %p91 = por %p89, %p90
      %p92 = scmp.le.s32.totalorder 1, %s11
      %p93 = scmp.lt.s32.totalorder %s11, 3
      %p94 = pnand %p92, %p93
      %p95 = pneg %p94
      // Predicated region
      $region9: #{tpu_custom_call.1} parent=5 // pred_check
        _
      $region10: #{tpu_custom_call.1} parent=5 // pred_check_branch
        %97 = sbr.rel (%p94) target = $region12
      $region11: #{tpu_custom_call.1} parent=5 // pred_region
        %s98 = ssub.s32 %s11, 1
        // Predicated region
        $region13: #{tpu_custom_call.1} parent=11 // pred_check
          %p99 = pneg %p58
        $region14: #{tpu_custom_call.1} parent=11 // pred_check_branch
          %101 = sbr.rel (%p99) target = $region16
        $region15: #{tpu_custom_call.1} parent=11 // pred_region
          _
        $region16: #{tpu_custom_call.1} parent=11 // pred_fallthru
          _
      $region12: #{tpu_custom_call.1} parent=5 // pred_fallthru
        _
      %p102 = scmp.lt.s32.totalorder %s11, 2
      // Predicated region
      $region17: #{tpu_custom_call.1} parent=5 // pred_check
        %p103 = pneg %p102
      $region18: #{tpu_custom_call.1} parent=5 // pred_check_branch
        %105 = sbr.rel (%p103) target = $region20
      $region19: #{tpu_custom_call.1} parent=5 // pred_region
        // Predicated region
        $region21: #{tpu_custom_call.1} parent=19 // pred_check
          %p106 = pneg %p31
        $region22: #{tpu_custom_call.1} parent=19 // pred_check_branch
          %108 = sbr.rel (%p106) target = $region24
        $region23: #{tpu_custom_call.1} parent=19 // pred_region
          %p109 = scmp.lt.s32.totalorder %s11, 1
          %s110 = scalar_select %p109, %s11, 1
          %s111 = smul.addr %s110, 8
          %s112 = scalar_lea.vmem %s0, %s111
        $region24: #{tpu_custom_call.1} parent=19 // pred_fallthru
          _
      $region20: #{tpu_custom_call.1} parent=5 // pred_fallthru
        _
      %p113 = scmp.le.s32.totalorder 1, %s11
      %p114 = scmp.lt.s32.totalorder %s11, 3
      %p115 = pnand %p113, %p114
      %p116 = pneg %p115
      // Predicated region
      $region25: #{tpu_custom_call.1} parent=5 // pred_check
        _
      $region26: #{tpu_custom_call.1} parent=5 // pred_check_branch
        %118 = sbr.rel (%p115) target = $region28
      $region27: #{tpu_custom_call.1} parent=5 // pred_region
        %s119 = ssub.s32 %s11, 1
        %p120 = scmp.lt.s32.totalorder %s16, 1
        %s121 = scalar_select %p120, %s16, 1
        %s122 = smul.addr %s121, 8
        %s123 = scalar_lea.vmem %s0, %s122
        %p124 = pneg %p37
        %p125 = pneg %p34
        %p126 = pneg %p58
        %p127 = pneg %p55
        %p128 = pneg %p84
        %p129 = pneg %p81
        %s130 = sand.u32 %s71, 1
        %s131 = scalar_lea.sflag [#allocation3], %s130
        %s132 = sand.u32 %s71, 1
        %s133 = smul.addr %s132, 8
        %s134 = scalar_lea.vmem [#allocation2], %s133
        %p135 = scmp.lt.s32.totalorder %s16, 1
        %s136 = scalar_select %p135, %s16, 1
        %s137 = smul.addr %s136, 8
        %s138 = scalar_lea.vmem %s0, %s137
        %v139 = vld [vmem:[%s138] sm:$0xff]
        %v140 = vld [vmem:[%s1] sm:$0xf]
        %vm141 = vcmp.eq.s32.totalorder %v139, 3
        %v142 = vsel %vm141, 1, 0
        %143 = vset.pattern.permute.xlu0 0
        %144 = vperm.xlu0 %143, %v142
        %v145 = vpop.permute.xlu0 %144
        %vm146 = vcmp.eq.s32.totalorder %v145, 1
        %v147 = vperm.slane %v140, 3
        %v148 = vsel %vm146, %v147, 0.0
        %vm149 = vcmp.eq.s32.totalorder %v139, 2
        %v150 = vsel %vm149, 1, 0
        %151 = vset.pattern.permute.xlu0 0
        %152 = vperm.xlu0 %151, %v150
        %v153 = vpop.permute.xlu0 %152
        %vm154 = vcmp.eq.s32.totalorder %v153, 1
        %v155 = vperm.slane %v140, 2
        %v156 = vsel %vm154, %v155, %v148
        %vm157 = vcmp.eq.s32.totalorder %v139, 1
        %v158 = vsel %vm157, 1, 0
        %159 = vset.pattern.permute.xlu0 0
        %160 = vperm.xlu0 %159, %v158
        %v161 = vpop.permute.xlu0 %160
        %vm162 = vcmp.eq.s32.totalorder %v161, 1
        %v163 = vperm.slane %v140, 1
        %v164 = vsel %vm162, %v163, %v156
        %vm165 = vcmp.eq.s32.totalorder %v139, 0
        %v166 = vsel %vm165, 1, 0
        %167 = vset.pattern.permute.xlu0 0
        %168 = vperm.xlu0 %167, %v166
        %v169 = vpop.permute.xlu0 %168
        %vm170 = vcmp.eq.s32.totalorder %v169, 1
        %v171 = vperm.slane %v140, 0
        %v172 = vsel %vm170, %v171, %v164
        %vm173 = vcmask 523264
        %174 = vst.msk [vmem:[%s134] sm:$0xff] %vm173, %v172
        %s175 = sand.u32 %s71, 1
        %s176 = scalar_lea.sflag [#allocation3], %s175
        %s177 = sand.u32 %s71, 1
        %s178 = smul.addr %s177, 8
        %s179 = scalar_lea.vmem [#allocation2], %s178
        // Predicated region
        $region29: #{tpu_custom_call.1} parent=27 // pred_check
          %p180 = pneg %p81
        $region30: #{tpu_custom_call.1} parent=27 // pred_check_branch
          %182 = sbr.rel (%p180) target = $region32
        $region31: #{tpu_custom_call.1} parent=27 // pred_region
          %184 = vsyncadd %s176, 0
          %s185 = smul.addr %s16, 8
          %s186 = scalar_lea.hbm %s2, %s185
          %s188 = sshll.u32 %s179, 4
          %s189 = int_to_ptr.vmem [resolvable:$true] %s188
          %s190 = sshll.u32 %s186, 4
          %s191 = int_to_ptr.hbm [resolvable:$true] %s190
          %193 = dma.vmem_to_hbm [thread:$0]  %s189, 128, %s191, %s176
        $region32: #{tpu_custom_call.1} parent=27 // pred_fallthru
          _
      $region28: #{tpu_custom_call.1} parent=5 // pred_fallthru
        _
      %p194 = scmp.le.s32.totalorder 2, %s11
      // Predicated region
      $region33: #{tpu_custom_call.1} parent=5 // pred_check
        %p195 = pneg %p194
      $region34: #{tpu_custom_call.1} parent=5 // pred_check_branch
        %197 = sbr.rel (%p195) target = $region36
      $region35: #{tpu_custom_call.1} parent=5 // pred_region
        %s198 = ssub.s32 %s11, 2
        // Predicated region
        $region37: #{tpu_custom_call.1} parent=35 // pred_check
          %p199 = pneg %p87
        $region38: #{tpu_custom_call.1} parent=35 // pred_check_branch
          %201 = sbr.rel (%p199) target = $region40
        $region39: #{tpu_custom_call.1} parent=35 // pred_region
          %s202 = sand.u32 %s72, 1
          %s203 = scalar_lea.sflag [#allocation3], %s202
          %s204 = sand.u32 %s72, 1
          %s205 = smul.addr %s204, 8
          %s206 = scalar_lea.vmem [#allocation2], %s205
          %208 = dma.done %s203, 128
        $region40: #{tpu_custom_call.1} parent=35 // pred_fallthru
          _
      $region36: #{tpu_custom_call.1} parent=5 // pred_fallthru
        _
    $region6: #{tpu_custom_call.1} parent=1 // loop_footer
      %s15 = sadd.s32 1, %s11
    $region7: #{tpu_custom_call.1} parent=1 // loop_footer_branch
      %10 = sbr.rel target = $region3
    $region8: #{tpu_custom_call.1} parent=1 // loop_exit
      _
    %209 = vsyncpa [#allocation3], 1
    %s210 = scalar_lea.sflag [#allocation3], 1
    %211 = vsyncpa %s210, 1

</llo_original>
